<compile_context>
chip_gen: v7x
topology: tpu7x:2x2x1
jax: 0.10.0
libtpu: 0.0.40
codegen_flags: <defaults>
</compile_context>

<pallas_src>
import math
import functools

import jax
import jax.numpy as jnp
from jax import lax
from jax.experimental import pallas as pl
from jax.experimental.pallas import tpu as pltpu


# -----------------------------------------------------------------------------
# Fused kernel: one grid step = `bt` batch elements, everything resident in VMEM.
# -----------------------------------------------------------------------------
def fused_gcn_kernel(adj_ref, diag_ref, x_ref, w_ref, bn_scale_ref, bn_shift_ref,
                     o_ref, pad_ref):
    """Block shapes:
      adj_ref      : (bt, H, W, N)    adjacency rows; token n split as (h, w)
      diag_ref     : (bt, H, W, 1)    adj[b, n, n]
      x_ref        : (bt, H, W, C)    input tokens in NHWC
      w_ref        : (3, 3, C)        depthwise 3x3 taps
      bn_scale_ref : (1, C)           gamma / sqrt(var + eps)
      bn_shift_ref : (1, C)           beta - mean * scale
      o_ref        : (bt, H, W, C)    output (wrapper reshapes to (B, N, C))
      pad_ref      : (bt, H+2, W+2, C) VMEM scratch: zero halo + scaled tokens
    """
    bt, H, W, C = x_ref.shape

    # ---- GCN normalization (no eye(), no (N,N) temporaries, no MXU matmul) --------------------
    # norm_adj is diagonal, so `norm_adj @ x` is a per-token scale by rsqrt(deg) * adj[n,n] * rsqrt(deg).
    deg = jnp.sum(adj_ref[...], axis=-1, keepdims=True)       # (bt, H, W, 1) row sums of adj
    r = lax.rsqrt(deg)                                         # deg^-1/2 (inf for zero-degree rows,
                                                               #           same caveat as the reference)
    tok_scale = r * diag_ref[...] * r                          # (bt, H, W, 1) == norm_adj[n, n]
    y = x_ref[...] * tok_scale                                 # (bt, H, W, C) == norm_adj @ x

    # ---- in-kernel zero padding (replaces the XLA-level jnp.pad HBM round trip) ---------------
    pad_ref[...] = jnp.zeros(pad_ref.shape, jnp.float32)
    pad_ref[:, 1:H + 1, 1:W + 1, :] = y

    # ---- depthwise 3x3 conv (cross-correlation, padding=1, stride=1, groups=C, no bias) -------
    xp = pad_ref[...]                                          # (bt, H+2, W+2, C)
    w = w_ref[...]                                             # (3, 3, C)
    acc = jnp.zeros((bt, H, W, C), jnp.float32)
    for di in range(3):                                        # static 3x3 tap loop (unrolled)
        for dj in range(3):
            acc = acc + xp[:, di:di + H, dj:dj + W, :] * w[di, dj]

    # ---- BatchNorm2d (eval mode, folded to per-channel scale/shift) + exact erf GELU ----------
    z = acc * bn_scale_ref[0] + bn_shift_ref[0]
    z = 0.5 * z * (1.0 + lax.erf(z * jnp.float32(0.7071067811865476)))
    o_ref[...] = z.astype(o_ref.dtype)


# -----------------------------------------------------------------------------
# Wrapper
# -----------------------------------------------------------------------------
def graph_convolution_forward(x, adj, conv_w_hwc, bn_scale, bn_shift,
                              image_size, patch_size, *, batch_block=8,
                              vmem_budget_bytes=8 * 1024 * 1024):
    B, N, C = x.shape
    H = image_size // patch_size
    W = H
    assert N == H * W, "token count must equal (image_size // patch_size) ** 2"
    assert adj.shape == (B, N, N), adj.shape
    assert conv_w_hwc.shape == (3, 3, C), conv_w_hwc.shape

    f32 = jnp.float32
    x = x.astype(f32)
    adj = adj.astype(f32)

    # ---- free layout plumbing (row-major-compatible reshapes; no extra data movement) ---------
    x4 = x.reshape(B, H, W, C)                                     # 'b (h w) c' -> 'b h w c'
    adj4 = adj.reshape(B, H, W, N)                                 # adjacency rows, token split as (h, w)
    # adj[b, n, n]: O(B*N) strided gather done in XLA so the kernel needs no eye()/mask work.
    adj_diag = jnp.diagonal(adj, axis1=1, axis2=2).reshape(B, H, W, 1)
    bn_scale2 = bn_scale.reshape(1, C).astype(f32)
    bn_shift2 = bn_shift.reshape(1, C).astype(f32)
    conv_w = conv_w_hwc.astype(f32)

    # ---- batch chunk per grid step: amortize per-step overhead, stay inside a VMEM budget -----
    lane = 128
    padded_c = ((C + lane - 1) // lane) * lane
    padded_n = ((N + lane - 1) // lane) * lane
    bytes_per_batch = 2 * 4 * (H * W * padded_n                    # adj block, double buffered
                               + 2 * H * W * padded_c              # x + out blocks
                               + H * W * lane)                     # diag block
    bt = int(max(1, min(B, batch_block, vmem_budget_bytes // bytes_per_batch)))
    while B % bt:
        bt -= 1

    out4 = pl.pallas_call(
        fused_gcn_kernel,
        out_shape=jax.ShapeDtypeStruct((B, H, W, C), f32),
        grid=(B // bt,),
        in_specs=[
            pl.BlockSpec((bt, H, W, N), lambda b: (b, 0, 0, 0)),   # adj rows
            pl.BlockSpec((bt, H, W, 1), lambda b: (b, 0, 0, 0)),   # adj diagonal
            pl.BlockSpec((bt, H, W, C), lambda b: (b, 0, 0, 0)),   # x
            pl.BlockSpec((3, 3, C), lambda b: (0, 0, 0)),          # depthwise weight
            pl.BlockSpec((1, C), lambda b: (0, 0)),                # folded BN scale
            pl.BlockSpec((1, C), lambda b: (0, 0)),                # folded BN shift
        ],
        out_specs=pl.BlockSpec((bt, H, W, C), lambda b: (b, 0, 0, 0)),
        scratch_shapes=[pltpu.VMEM((bt, H + 2, W + 2, C), f32)],   # halo-padded activation
        compiler_params=pltpu.CompilerParams(dimension_semantics=("parallel",)),
    )(adj4, adj_diag, x4, conv_w, bn_scale2, bn_shift2)

    # 'b h w c' -> 'b (h w) c'   (free, row-major compatible)
    return out4.reshape(B, N, C)


if __name__ == "__main__":
    key = jax.random.PRNGKey(0)
    k1, k2, k3 = jax.random.split(key, 3)

    # Small shapes consistent with the module.  The depthwise conv (groups=in_features) followed by
    # BatchNorm2d(in_features) requires out_features == in_features in practice.
    B = 2
    in_features = out_features = 8
    image_size, patch_size = 32, 4                 # h = w = 8  ->  N = 64 tokens
    H = image_size // patch_size
    N = H * H

    x = jax.random.normal(k1, (B, N, in_features), jnp.float32)
    # strictly positive adjacency so degree^-0.5 is well defined (same caveat as the reference code)
    adj = jax.random.uniform(k2, (B, N, N), jnp.float32, minval=0.1, maxval=1.0)

    # Depthwise conv weight (PyTorch stores (C, 1, 3, 3); here (3, 3, C)), kaiming-uniform-ish init.
    conv_w_hwc = jax.random.uniform(
        k3, (3, 3, in_features), jnp.float32, minval=-1.0, maxval=1.0) / math.sqrt(9.0)

    # BatchNorm2d eval-mode defaults folded to per-channel scale/shift.
    gamma = jnp.ones((in_features,), jnp.float32)
    beta = jnp.zeros((in_features,), jnp.float32)
    running_mean = jnp.zeros((in_features,), jnp.float32)
    running_var = jnp.ones((in_features,), jnp.float32)
    eps = 1e-5
    bn_scale = gamma * lax.rsqrt(running_var + eps)
    bn_shift = beta - running_mean * bn_scale

    fwd = jax.jit(functools.partial(graph_convolution_forward,
                                    image_size=image_size, patch_size=patch_size))
    out = jax.block_until_ready(fwd(x, adj, conv_w_hwc, bn_scale, bn_shift))

    assert out.shape == (B, N, out_features), out.shape
    assert out.dtype == jnp.float32
    assert bool(jnp.all(jnp.isfinite(out)))

    # Pure-XLA reference following the PyTorch code literally (explicit eye, full matmul, NHWC conv).
    def reference(x, adj, w_hwc, bn_scale, bn_shift):
        deg = jnp.power(jnp.sum(adj, axis=-1), -0.5)               # (B, N)
        eye = jnp.eye(N, dtype=adj.dtype)
        degree_diag = deg[:, :, None] * eye                         # (B, N, N)
        norm_adj = degree_diag * adj * degree_diag                  # elementwise, as in the torch code
        y = jnp.matmul(norm_adj, x)                                 # (B, N, C)
        y = y.reshape(B, H, H, in_features)                         # token order preserved (NHWC)
        yp = jnp.pad(y, ((0, 0), (1, 1), (1, 1), (0, 0)))
        acc = jnp.zeros_like(y)
        for di in range(3):
            for dj in range(3):
                acc = acc + yp[:, di:di + H, dj:dj + H, :] * w_hwc[di, dj]
        z = acc * bn_scale + bn_shift
        z = 0.5 * z * (1.0 + lax.erf(z / jnp.sqrt(2.0)))
        return z.reshape(B, N, in_features)

    ref = reference(x, adj, conv_w_hwc, bn_scale, bn_shift)
    assert jnp.allclose(out, ref, rtol=1e-5, atol=1e-5), float(jnp.max(jnp.abs(out - ref)))

    print("KERNEL_OK")
</pallas_src>

<mosaic_0001>
module attributes {stable_mosaic.version = 11 : i64} {
  func.func @fused_gcn_kernel(%arg0: i32, %arg1: memref<2x8x8x64xf32, #tpu.memory_space<vmem>>, %arg2: memref<2x8x8x1xf32, #tpu.memory_space<vmem>>, %arg3: memref<2x8x8x8xf32, #tpu.memory_space<vmem>>, %arg4: memref<3x3x8xf32, #tpu.memory_space<vmem>>, %arg5: memref<1x8xf32, #tpu.memory_space<vmem>>, %arg6: memref<1x8xf32, #tpu.memory_space<vmem>>, %arg7: memref<2x8x8x8xf32, #tpu.memory_space<vmem>>, %arg8: memref<2x10x10x8xf32, #tpu.memory_space<vmem>>) attributes {dimension_semantics = [#tpu.dimension_semantics<parallel>], iteration_bounds = array<i64: 1>, scalar_prefetch = 0 : i64, scratch_operands = 1 : i64, tpu.core_type = #tpu.core_type<tc>, window_params = [{transform_indices = @transform_0, window_bounds = array<i64: 2, 8, 8, 64>}, {transform_indices = @transform_1, window_bounds = array<i64: 2, 8, 8, 1>}, {transform_indices = @transform_2, window_bounds = array<i64: 2, 8, 8, 8>}, {pipeline_mode = #tpu.pipeline_mode<synchronous>, transform_indices = @transform_3, window_bounds = array<i64: 3, 3, 8>}, {pipeline_mode = #tpu.pipeline_mode<synchronous>, transform_indices = @transform_4, window_bounds = array<i64: 1, 8>}, {pipeline_mode = #tpu.pipeline_mode<synchronous>, transform_indices = @transform_5, window_bounds = array<i64: 1, 8>}, {transform_indices = @transform_6, window_bounds = array<i64: 2, 8, 8, 8>}]} {
    %c0 = arith.constant 0 : index
    %c0_0 = arith.constant 0 : index
    %c0_1 = arith.constant 0 : index
    %c0_2 = arith.constant 0 : index
    %0 = vector.load %arg1[%c0, %c0_0, %c0_1, %c0_2] : memref<2x8x8x64xf32, #tpu.memory_space<vmem>>, vector<2x8x8x64xf32>
    %cst = arith.constant dense<0.000000e+00> : vector<2x8x8xf32>
    %1 = vector.multi_reduction <add>, %0, %cst [3] : vector<2x8x8x64xf32> to vector<2x8x8xf32>
    %2 = vector.shape_cast %1 : vector<2x8x8xf32> to vector<2x8x8x1xf32>
    %3 = math.rsqrt %2 : vector<2x8x8x1xf32>
    %c0_3 = arith.constant 0 : index
    %c0_4 = arith.constant 0 : index
    %c0_5 = arith.constant 0 : index
    %c0_6 = arith.constant 0 : index
    %4 = vector.load %arg2[%c0_3, %c0_4, %c0_5, %c0_6] : memref<2x8x8x1xf32, #tpu.memory_space<vmem>>, vector<2x8x8x1xf32>
    %5 = arith.mulf %3, %4 : vector<2x8x8x1xf32>
    %6 = arith.mulf %5, %3 : vector<2x8x8x1xf32>
    %c0_7 = arith.constant 0 : index
    %c0_8 = arith.constant 0 : index
    %c0_9 = arith.constant 0 : index
    %c0_10 = arith.constant 0 : index
    %7 = vector.load %arg3[%c0_7, %c0_8, %c0_9, %c0_10] : memref<2x8x8x8xf32, #tpu.memory_space<vmem>>, vector<2x8x8x8xf32>
    %8 = vector.broadcast %6 : vector<2x8x8x1xf32> to vector<2x8x8x8xf32>
    %9 = arith.mulf %7, %8 : vector<2x8x8x8xf32>
    %cst_11 = arith.constant 0.000000e+00 : f32
    %10 = vector.broadcast %cst_11 : f32 to vector<2x10x10x8xf32>
    %c0_12 = arith.constant 0 : index
    %c0_13 = arith.constant 0 : index
    %c0_14 = arith.constant 0 : index
    %c0_15 = arith.constant 0 : index
    %11 = vector.load %arg8[%c0_12, %c0_13, %c0_14, %c0_15] : memref<2x10x10x8xf32, #tpu.memory_space<vmem>>, vector<2x10x10x8xf32>
    tpu.vector_store %arg8[%c0_12, %c0_13, %c0_14, %c0_15], %10 {strides = array<i32>} : memref<2x10x10x8xf32, #tpu.memory_space<vmem>>, vector<2x10x10x8xf32>,
    %c0_16 = arith.constant 0 : index
    %c1 = arith.constant 1 : index
    %c1_17 = arith.constant 1 : index
    %c0_18 = arith.constant 0 : index
    %12 = vector.load %arg8[%c0_16, %c1, %c1_17, %c0_18] : memref<2x10x10x8xf32, #tpu.memory_space<vmem>>, vector<2x8x8x8xf32>
    tpu.vector_store %arg8[%c0_16, %c1, %c1_17, %c0_18], %9 {strides = array<i32>} : memref<2x10x10x8xf32, #tpu.memory_space<vmem>>, vector<2x8x8x8xf32>,
    %c0_19 = arith.constant 0 : index
    %c0_20 = arith.constant 0 : index
    %c0_21 = arith.constant 0 : index
    %c0_22 = arith.constant 0 : index
    %13 = vector.load %arg8[%c0_19, %c0_20, %c0_21, %c0_22] : memref<2x10x10x8xf32, #tpu.memory_space<vmem>>, vector<2x10x10x8xf32>
    %c0_23 = arith.constant 0 : index
    %c0_24 = arith.constant 0 : index
    %c0_25 = arith.constant 0 : index
    %14 = vector.load %arg4[%c0_23, %c0_24, %c0_25] : memref<3x3x8xf32, #tpu.memory_space<vmem>>, vector<3x3x8xf32>
    %cst_26 = arith.constant 0.000000e+00 : f32
    %15 = vector.broadcast %cst_26 : f32 to vector<2x8x8x8xf32>
    %16 = vector.extract_strided_slice %13 {offsets = [0, 0, 0, 0], sizes = [2, 8, 8, 8], strides = [1, 1, 1, 1]} : vector<2x10x10x8xf32> to vector<2x8x8x8xf32>
    %17 = vector.extract_strided_slice %14 {offsets = [0, 0, 0], sizes = [1, 1, 8], strides = [1, 1, 1]} : vector<3x3x8xf32> to vector<1x1x8xf32>
    %18 = vector.shape_cast %17 : vector<1x1x8xf32> to vector<8xf32>
    %19 = vector.shape_cast %18 : vector<8xf32> to vector<1x1x1x8xf32>
    %20 = vector.broadcast %19 : vector<1x1x1x8xf32> to vector<2x8x8x8xf32>
    %21 = arith.mulf %16, %20 : vector<2x8x8x8xf32>
    %22 = arith.addf %15, %21 : vector<2x8x8x8xf32>
    %23 = vector.extract_strided_slice %13 {offsets = [0, 0, 1, 0], sizes = [2, 8, 8, 8], strides = [1, 1, 1, 1]} : vector<2x10x10x8xf32> to vector<2x8x8x8xf32>
    %24 = vector.extract_strided_slice %14 {offsets = [0, 1, 0], sizes = [1, 1, 8], strides = [1, 1, 1]} : vector<3x3x8xf32> to vector<1x1x8xf32>
    %25 = vector.shape_cast %24 : vector<1x1x8xf32> to vector<8xf32>
    %26 = vector.shape_cast %25 : vector<8xf32> to vector<1x1x1x8xf32>
    %27 = vector.broadcast %26 : vector<1x1x1x8xf32> to vector<2x8x8x8xf32>
    %28 = arith.mulf %23, %27 : vector<2x8x8x8xf32>
    %29 = arith.addf %22, %28 : vector<2x8x8x8xf32>
    %30 = vector.extract_strided_slice %13 {offsets = [0, 0, 2, 0], sizes = [2, 8, 8, 8], strides = [1, 1, 1, 1]} : vector<2x10x10x8xf32> to vector<2x8x8x8xf32>
    %31 = vector.extract_strided_slice %14 {offsets = [0, 2, 0], sizes = [1, 1, 8], strides = [1, 1, 1]} : vector<3x3x8xf32> to vector<1x1x8xf32>
    %32 = vector.shape_cast %31 : vector<1x1x8xf32> to vector<8xf32>
    %33 = vector.shape_cast %32 : vector<8xf32> to vector<1x1x1x8xf32>
    %34 = vector.broadcast %33 : vector<1x1x1x8xf32> to vector<2x8x8x8xf32>
    %35 = arith.mulf %30, %34 : vector<2x8x8x8xf32>
    %36 = arith.addf %29, %35 : vector<2x8x8x8xf32>
    %37 = vector.extract_strided_slice %13 {offsets = [0, 1, 0, 0], sizes = [2, 8, 8, 8], strides = [1, 1, 1, 1]} : vector<2x10x10x8xf32> to vector<2x8x8x8xf32>
    %38 = vector.extract_strided_slice %14 {offsets = [1, 0, 0], sizes = [1, 1, 8], strides = [1, 1, 1]} : vector<3x3x8xf32> to vector<1x1x8xf32>
    %39 = vector.shape_cast %38 : vector<1x1x8xf32> to vector<8xf32>
    %40 = vector.shape_cast %39 : vector<8xf32> to vector<1x1x1x8xf32>
    %41 = vector.broadcast %40 : vector<1x1x1x8xf32> to vector<2x8x8x8xf32>
    %42 = arith.mulf %37, %41 : vector<2x8x8x8xf32>
    %43 = arith.addf %36, %42 : vector<2x8x8x8xf32>
    %44 = vector.extract_strided_slice %13 {offsets = [0, 1, 1, 0], sizes = [2, 8, 8, 8], strides = [1, 1, 1, 1]} : vector<2x10x10x8xf32> to vector<2x8x8x8xf32>
    %45 = vector.extract_strided_slice %14 {offsets = [1, 1, 0], sizes = [1, 1, 8], strides = [1, 1, 1]} : vector<3x3x8xf32> to vector<1x1x8xf32>
    %46 = vector.shape_cast %45 : vector<1x1x8xf32> to vector<8xf32>
    %47 = vector.shape_cast %46 : vector<8xf32> to vector<1x1x1x8xf32>
    %48 = vector.broadcast %47 : vector<1x1x1x8xf32> to vector<2x8x8x8xf32>
    %49 = arith.mulf %44, %48 : vector<2x8x8x8xf32>
    %50 = arith.addf %43, %49 : vector<2x8x8x8xf32>
    %51 = vector.extract_strided_slice %13 {offsets = [0, 1, 2, 0], sizes = [2, 8, 8, 8], strides = [1, 1, 1, 1]} : vector<2x10x10x8xf32> to vector<2x8x8x8xf32>
    %52 = vector.extract_strided_slice %14 {offsets = [1, 2, 0], sizes = [1, 1, 8], strides = [1, 1, 1]} : vector<3x3x8xf32> to vector<1x1x8xf32>
    %53 = vector.shape_cast %52 : vector<1x1x8xf32> to vector<8xf32>
    %54 = vector.shape_cast %53 : vector<8xf32> to vector<1x1x1x8xf32>
    %55 = vector.broadcast %54 : vector<1x1x1x8xf32> to vector<2x8x8x8xf32>
    %56 = arith.mulf %51, %55 : vector<2x8x8x8xf32>
    %57 = arith.addf %50, %56 : vector<2x8x8x8xf32>
    %58 = vector.extract_strided_slice %13 {offsets = [0, 2, 0, 0], sizes = [2, 8, 8, 8], strides = [1, 1, 1, 1]} : vector<2x10x10x8xf32> to vector<2x8x8x8xf32>
    %59 = vector.extract_strided_slice %14 {offsets = [2, 0, 0], sizes = [1, 1, 8], strides = [1, 1, 1]} : vector<3x3x8xf32> to vector<1x1x8xf32>
    %60 = vector.shape_cast %59 : vector<1x1x8xf32> to vector<8xf32>
    %61 = vector.shape_cast %60 : vector<8xf32> to vector<1x1x1x8xf32>
    %62 = vector.broadcast %61 : vector<1x1x1x8xf32> to vector<2x8x8x8xf32>
    %63 = arith.mulf %58, %62 : vector<2x8x8x8xf32>
    %64 = arith.addf %57, %63 : vector<2x8x8x8xf32>
    %65 = vector.extract_strided_slice %13 {offsets = [0, 2, 1, 0], sizes = [2, 8, 8, 8], strides = [1, 1, 1, 1]} : vector<2x10x10x8xf32> to vector<2x8x8x8xf32>
    %66 = vector.extract_strided_slice %14 {offsets = [2, 1, 0], sizes = [1, 1, 8], strides = [1, 1, 1]} : vector<3x3x8xf32> to vector<1x1x8xf32>
    %67 = vector.shape_cast %66 : vector<1x1x8xf32> to vector<8xf32>
    %68 = vector.shape_cast %67 : vector<8xf32> to vector<1x1x1x8xf32>
    %69 = vector.broadcast %68 : vector<1x1x1x8xf32> to vector<2x8x8x8xf32>
    %70 = arith.mulf %65, %69 : vector<2x8x8x8xf32>
    %71 = arith.addf %64, %70 : vector<2x8x8x8xf32>
    %72 = vector.extract_strided_slice %13 {offsets = [0, 2, 2, 0], sizes = [2, 8, 8, 8], strides = [1, 1, 1, 1]} : vector<2x10x10x8xf32> to vector<2x8x8x8xf32>
    %73 = vector.extract_strided_slice %14 {offsets = [2, 2, 0], sizes = [1, 1, 8], strides = [1, 1, 1]} : vector<3x3x8xf32> to vector<1x1x8xf32>
    %74 = vector.shape_cast %73 : vector<1x1x8xf32> to vector<8xf32>
    %75 = vector.shape_cast %74 : vector<8xf32> to vector<1x1x1x8xf32>
    %76 = vector.broadcast %75 : vector<1x1x1x8xf32> to vector<2x8x8x8xf32>
    %77 = arith.mulf %72, %76 : vector<2x8x8x8xf32>
    %78 = arith.addf %71, %77 : vector<2x8x8x8xf32>
    %c0_27 = arith.constant 0 : index
    %c0_28 = arith.constant 0 : index
    %79 = vector.load %arg5[%c0_27, %c0_28] : memref<1x8xf32, #tpu.memory_space<vmem>>, vector<1x8xf32>
    %80 = vector.shape_cast %79 : vector<1x8xf32> to vector<8xf32>
    %81 = vector.shape_cast %80 : vector<8xf32> to vector<1x1x1x8xf32>
    %82 = vector.broadcast %81 : vector<1x1x1x8xf32> to vector<2x8x8x8xf32>
    %83 = arith.mulf %78, %82 : vector<2x8x8x8xf32>
    %c0_29 = arith.constant 0 : index
    %c0_30 = arith.constant 0 : index
    %84 = vector.load %arg6[%c0_29, %c0_30] : memref<1x8xf32, #tpu.memory_space<vmem>>, vector<1x8xf32>
    %85 = vector.shape_cast %84 : vector<1x8xf32> to vector<8xf32>
    %86 = vector.shape_cast %85 : vector<8xf32> to vector<1x1x1x8xf32>
    %87 = vector.broadcast %86 : vector<1x1x1x8xf32> to vector<2x8x8x8xf32>
    %88 = arith.addf %83, %87 : vector<2x8x8x8xf32>
    %cst_31 = arith.constant 5.000000e-01 : f32
    %89 = vector.broadcast %cst_31 : f32 to vector<2x8x8x8xf32>
    %90 = arith.mulf %89, %88 : vector<2x8x8x8xf32>
    %cst_32 = arith.constant 0.707106769 : f32
    %91 = vector.broadcast %cst_32 : f32 to vector<2x8x8x8xf32>
    %92 = arith.mulf %88, %91 : vector<2x8x8x8xf32>
    %93 = math.erf %92 : vector<2x8x8x8xf32>
    %cst_33 = arith.constant 1.000000e+00 : f32
    %94 = vector.broadcast %cst_33 : f32 to vector<2x8x8x8xf32>
    %95 = arith.addf %94, %93 : vector<2x8x8x8xf32>
    %96 = arith.mulf %90, %95 : vector<2x8x8x8xf32>
    %c0_34 = arith.constant 0 : index
    %c0_35 = arith.constant 0 : index
    %c0_36 = arith.constant 0 : index
    %c0_37 = arith.constant 0 : index
    %97 = vector.load %arg7[%c0_34, %c0_35, %c0_36, %c0_37] : memref<2x8x8x8xf32, #tpu.memory_space<vmem>>, vector<2x8x8x8xf32>
    tpu.vector_store %arg7[%c0_34, %c0_35, %c0_36, %c0_37], %96 {strides = array<i32>} : memref<2x8x8x8xf32, #tpu.memory_space<vmem>>, vector<2x8x8x8xf32>,
    return
  }
  func.func @transform_0(%arg0: i32) -> (i32, i32, i32, i32) {
    %c0_i32 = arith.constant 0 : i32
    %c0_i32_0 = arith.constant 0 : i32
    %c0_i32_1 = arith.constant 0 : i32
    %c0_i32_2 = arith.constant 0 : i32
    return %arg0, %c0_i32, %c0_i32_0, %c0_i32_1 : i32, i32, i32, i32
  }
  func.func @transform_1(%arg0: i32) -> (i32, i32, i32, i32) {
    %c0_i32 = arith.constant 0 : i32
    %c0_i32_0 = arith.constant 0 : i32
    %c0_i32_1 = arith.constant 0 : i32
    %c0_i32_2 = arith.constant 0 : i32
    return %arg0, %c0_i32, %c0_i32_0, %c0_i32_1 : i32, i32, i32, i32
  }
  func.func @transform_2(%arg0: i32) -> (i32, i32, i32, i32) {
    %c0_i32 = arith.constant 0 : i32
    %c0_i32_0 = arith.constant 0 : i32
    %c0_i32_1 = arith.constant 0 : i32
    %c0_i32_2 = arith.constant 0 : i32
    return %arg0, %c0_i32, %c0_i32_0, %c0_i32_1 : i32, i32, i32, i32
  }
  func.func @transform_3(%arg0: i32) -> (i32, i32, i32) {
    %c0_i32 = arith.constant 0 : i32
    %c0_i32_0 = arith.constant 0 : i32
    %c0_i32_1 = arith.constant 0 : i32
    %c0_i32_2 = arith.constant 0 : i32
    return %c0_i32, %c0_i32_0, %c0_i32_1 : i32, i32, i32
  }
  func.func @transform_4(%arg0: i32) -> (i32, i32) {
    %c0_i32 = arith.constant 0 : i32
    %c0_i32_0 = arith.constant 0 : i32
    %c0_i32_1 = arith.constant 0 : i32
    return %c0_i32, %c0_i32_0 : i32, i32
  }
  func.func @transform_5(%arg0: i32) -> (i32, i32) {
    %c0_i32 = arith.constant 0 : i32
    %c0_i32_0 = arith.constant 0 : i32
    %c0_i32_1 = arith.constant 0 : i32
    return %c0_i32, %c0_i32_0 : i32, i32
  }
  func.func @transform_6(%arg0: i32) -> (i32, i32, i32, i32) {
    %c0_i32 = arith.constant 0 : i32
    %c0_i32_0 = arith.constant 0 : i32
    %c0_i32_1 = arith.constant 0 : i32
    %c0_i32_2 = arith.constant 0 : i32
    return %arg0, %c0_i32, %c0_i32_0, %c0_i32_1 : i32, i32, i32, i32
  }
}

</mosaic_0001>

<llo_original>
// kernel: graph_convolution_forward.1
$region0: #{graph_convolution_forward.1}
  #allocation0 [shape = 'u32[]', space=smem, size = 0x4, offset = 0x4, fixed_abs, tag = 'smem constant byte address 0x4 - core index']
  #allocation1 [shape = 'u32[144,128]{1,0:T(1,128)}', space=vmem, size = 0x12000, scoped, tag = 'internal scratch']
  #allocation2 [shape = 'f32[2,10,10,8]{3,2,1,0:T(8,128)}', space=vmem, size = 0x28000, scoped, tag = 'scratch operand']
  %s0 = inlined_call_operand.vmem [shape: f32[2,8,8,64], index: 0, kind: input, shape index: {}]
  %s1 = inlined_call_operand.vmem [shape: f32[2,8,8,1], index: 1, kind: input, shape index: {}]
  %s2 = inlined_call_operand.vmem [shape: f32[2,8,8,8], index: 2, kind: input, shape index: {}]
  %s3 = inlined_call_operand.vmem [shape: f32[3,3,8], index: 3, kind: input, shape index: {}]
  %s4 = inlined_call_operand.vmem [shape: f32[1,8], index: 4, kind: input, shape index: {}]
  %s5 = inlined_call_operand.vmem [shape: f32[1,8], index: 5, kind: input, shape index: {}]
  %s6 = inlined_call_operand.vmem [shape: f32[2,8,8,8], index: 6, kind: output, shape index: {}]
  %s7 = sld [smem:[#allocation0]]
  $region34: #{graph_convolution_forward.1} parent=0
    _
  %s9 = ssub.s32 1, %s7
  %s10 = scalar_select 0, %s9, %s7
  // Predicated region
  $region2: #{graph_convolution_forward.1} parent=0 // pred_check
    _
  $region3: #{graph_convolution_forward.1} parent=0 // pred_check_branch
    %12 = sbr.rel (0) target = $region5
  $region4: #{graph_convolution_forward.1} parent=0 // pred_region
    _
  $region5: #{graph_convolution_forward.1} parent=0 // pred_fallthru
    _
  // Predicated region
  $region6: #{graph_convolution_forward.1} parent=0 // pred_check
    _
  $region7: #{graph_convolution_forward.1} parent=0 // pred_check_branch
    %14 = sbr.rel (0) target = $region9
  $region8: #{graph_convolution_forward.1} parent=0 // pred_region
    _
  $region9: #{graph_convolution_forward.1} parent=0 // pred_fallthru
    _
  // Predicated region
  $region10: #{graph_convolution_forward.1} parent=0 // pred_check
    _
  $region11: #{graph_convolution_forward.1} parent=0 // pred_check_branch
    %16 = sbr.rel (0) target = $region13
  $region12: #{graph_convolution_forward.1} parent=0 // pred_region
    _
  $region13: #{graph_convolution_forward.1} parent=0 // pred_fallthru
    _
  // Predicated region
  $region14: #{graph_convolution_forward.1} parent=0 // pred_check
    _
  $region15: #{graph_convolution_forward.1} parent=0 // pred_check_branch
    %18 = sbr.rel (0) target = $region17
  $region16: #{graph_convolution_forward.1} parent=0 // pred_region
    _
  $region17: #{graph_convolution_forward.1} parent=0 // pred_fallthru
    _
  // Predicated region
  $region18: #{graph_convolution_forward.1} parent=0 // pred_check
    _
  $region19: #{graph_convolution_forward.1} parent=0 // pred_check_branch
    %20 = sbr.rel (0) target = $region21
  $region20: #{graph_convolution_forward.1} parent=0 // pred_region
    _
  $region21: #{graph_convolution_forward.1} parent=0 // pred_fallthru
    _
  // Predicated region
  $region22: #{graph_convolution_forward.1} parent=0 // pred_check
    _
  $region23: #{graph_convolution_forward.1} parent=0 // pred_check_branch
    %22 = sbr.rel (0) target = $region25
  $region24: #{graph_convolution_forward.1} parent=0 // pred_region
    _
  $region25: #{graph_convolution_forward.1} parent=0 // pred_fallthru
    _
  %v23 = vld [vmem:[%s0] sm:$0xff]
  %v24 = vld [vmem:[%s0 + $0x8] sm:$0xff]
  %v25 = vld [vmem:[%s0 + $0x10] sm:$0xff]
  %v26 = vld [vmem:[%s0 + $0x18] sm:$0xff]
  %v27 = vld [vmem:[%s0 + $0x20] sm:$0xff]
  %v28 = vld [vmem:[%s0 + $0x28] sm:$0xff]
  %v29 = vld [vmem:[%s0 + $0x30] sm:$0xff]
  %v30 = vld [vmem:[%s0 + $0x38] sm:$0xff]
  %v31 = vld [vmem:[%s0 + $0x40] sm:$0xff]
  %v32 = vld [vmem:[%s0 + $0x48] sm:$0xff]
  %v33 = vld [vmem:[%s0 + $0x50] sm:$0xff]
  %v34 = vld [vmem:[%s0 + $0x58] sm:$0xff]
  %v35 = vld [vmem:[%s0 + $0x60] sm:$0xff]
  %v36 = vld [vmem:[%s0 + $0x68] sm:$0xff]
  %v37 = vld [vmem:[%s0 + $0x70] sm:$0xff]
  %v38 = vld [vmem:[%s0 + $0x78] sm:$0xff]
  %vm39 = vcmask 523264
  %v40 = vsel %vm39, %v23, 0.0
  %41 = vadd.xlane.f32.xlu0 %v40
  %v42 = vpop.xlane.xlu0 %41
  %v43 = vsel %vm39, %v24, 0.0
  %44 = vadd.xlane.f32.xlu0 %v43
  %v45 = vpop.xlane.xlu0 %44
  %v46 = vsel %vm39, %v25, 0.0
  %47 = vadd.xlane.f32.xlu0 %v46
  %v48 = vpop.xlane.xlu0 %47
  %v49 = vsel %vm39, %v26, 0.0
  %50 = vadd.xlane.f32.xlu0 %v49
  %v51 = vpop.xlane.xlu0 %50
  %v52 = vsel %vm39, %v27, 0.0
  %53 = vadd.xlane.f32.xlu0 %v52
  %v54 = vpop.xlane.xlu0 %53
  %v55 = vsel %vm39, %v28, 0.0
  %56 = vadd.xlane.f32.xlu0 %v55
  %v57 = vpop.xlane.xlu0 %56
  %v58 = vsel %vm39, %v29, 0.0
  %59 = vadd.xlane.f32.xlu0 %v58
  %v60 = vpop.xlane.xlu0 %59
  %v61 = vsel %vm39, %v30, 0.0
  %62 = vadd.xlane.f32.xlu0 %v61
  %v63 = vpop.xlane.xlu0 %62
  %v64 = vsel %vm39, %v31, 0.0
  %65 = vadd.xlane.f32.xlu0 %v64
  %v66 = vpop.xlane.xlu0 %65
  %v67 = vsel %vm39, %v32, 0.0
  %68 = vadd.xlane.f32.xlu0 %v67
  %v69 = vpop.xlane.xlu0 %68
  %v70 = vsel %vm39, %v33, 0.0
  %71 = vadd.xlane.f32.xlu0 %v70
  %v72 = vpop.xlane.xlu0 %71
  %v73 = vsel %vm39, %v34, 0.0
  %74 = vadd.xlane.f32.xlu0 %v73
  %v75 = vpop.xlane.xlu0 %74
  %v76 = vsel %vm39, %v35, 0.0
  %77 = vadd.xlane.f32.xlu0 %v76
  %v78 = vpop.xlane.xlu0 %77
  %v79 = vsel %vm39, %v36, 0.0
  %80 = vadd.xlane.f32.xlu0 %v79
  %v81 = vpop.xlane.xlu0 %80
  %v82 = vsel %vm39, %v37, 0.0
  %83 = vadd.xlane.f32.xlu0 %v82
  %v84 = vpop.xlane.xlu0 %83
  %v85 = vsel %vm39, %v38, 0.0
  %86 = vadd.xlane.f32.xlu0 %v85
  %v87 = vpop.xlane.xlu0 %86
  %v88 = vrsqrt.pop %v42
  %v89 = vrsqrt.pop %v45
  %v90 = vrsqrt.pop %v48
  %v91 = vrsqrt.pop %v51
  %v92 = vrsqrt.pop %v54
  %v93 = vrsqrt.pop %v57
  %v94 = vrsqrt.pop %v60
  %v95 = vrsqrt.pop %v63
  %v96 = vrsqrt.pop %v66
  %v97 = vrsqrt.pop %v69
  %v98 = vrsqrt.pop %v72
  %v99 = vrsqrt.pop %v75
  %v100 = vrsqrt.pop %v78
  %v101 = vrsqrt.pop %v81
  %v102 = vrsqrt.pop %v84
  %v103 = vrsqrt.pop %v87
  %v104 = vld [vmem:[%s1] sm:$0xff]
  %v105 = vld [vmem:[%s1 + $0x8] sm:$0xff]
  %v106 = vld [vmem:[%s1 + $0x10] sm:$0xff]
  %v107 = vld [vmem:[%s1 + $0x18] sm:$0xff]
  %v108 = vld [vmem:[%s1 + $0x20] sm:$0xff]
  %v109 = vld [vmem:[%s1 + $0x28] sm:$0xff]
  %v110 = vld [vmem:[%s1 + $0x30] sm:$0xff]
  %v111 = vld [vmem:[%s1 + $0x38] sm:$0xff]
  %v112 = vld [vmem:[%s1 + $0x40] sm:$0xff]
  %v113 = vld [vmem:[%s1 + $0x48] sm:$0xff]
  %v114 = vld [vmem:[%s1 + $0x50] sm:$0xff]
  %v115 = vld [vmem:[%s1 + $0x58] sm:$0xff]
  %v116 = vld [vmem:[%s1 + $0x60] sm:$0xff]
  %v117 = vld [vmem:[%s1 + $0x68] sm:$0xff]
  %v118 = vld [vmem:[%s1 + $0x70] sm:$0xff]
  %v119 = vld [vmem:[%s1 + $0x78] sm:$0xff]
  %v120 = vmul.f32 %v88, %v104
  %v121 = vmul.f32 %v89, %v105
  %v122 = vmul.f32 %v90, %v106
  %v123 = vmul.f32 %v91, %v107
  %v124 = vmul.f32 %v92, %v108
  %v125 = vmul.f32 %v93, %v109
  %v126 = vmul.f32 %v94, %v110
  %v127 = vmul.f32 %v95, %v111
  %v128 = vmul.f32 %v96, %v112
  %v129 = vmul.f32 %v97, %v113
  %v130 = vmul.f32 %v98, %v114
  %v131 = vmul.f32 %v99, %v115
  %v132 = vmul.f32 %v100, %v116
  %v133 = vmul.f32 %v101, %v117
  %v134 = vmul.f32 %v102, %v118
  %v135 = vmul.f32 %v103, %v119
  %v136 = vmul.f32 %v120, %v88
  %v137 = vmul.f32 %v121, %v89
  %v138 = vmul.f32 %v122, %v90
  %v139 = vmul.f32 %v123, %v91
  %v140 = vmul.f32 %v124, %v92
  %v141 = vmul.f32 %v125, %v93
  %v142 = vmul.f32 %v126, %v94
  %v143 = vmul.f32 %v127, %v95
  %v144 = vmul.f32 %v128, %v96
  %v145 = vmul.f32 %v129, %v97
  %v146 = vmul.f32 %v130, %v98
  %v147 = vmul.f32 %v131, %v99
  %v148 = vmul.f32 %v132, %v100
  %v149 = vmul.f32 %v133, %v101
  %v150 = vmul.f32 %v134, %v102
  %v151 = vmul.f32 %v135, %v103
  %v152 = vld [vmem:[%s2] sm:$0xff]
  %v153 = vld [vmem:[%s2 + $0x8] sm:$0xff]
  %v154 = vld [vmem:[%s2 + $0x10] sm:$0xff]
  %v155 = vld [vmem:[%s2 + $0x18] sm:$0xff]
  %v156 = vld [vmem:[%s2 + $0x20] sm:$0xff]
  %v157 = vld [vmem:[%s2 + $0x28] sm:$0xff]
  %v158 = vld [vmem:[%s2 + $0x30] sm:$0xff]
  %v159 = vld [vmem:[%s2 + $0x38] sm:$0xff]
  %v160 = vld [vmem:[%s2 + $0x40] sm:$0xff]
  %v161 = vld [vmem:[%s2 + $0x48] sm:$0xff]
  %v162 = vld [vmem:[%s2 + $0x50] sm:$0xff]
  %v163 = vld [vmem:[%s2 + $0x58] sm:$0xff]
  %v164 = vld [vmem:[%s2 + $0x60] sm:$0xff]
  %v165 = vld [vmem:[%s2 + $0x68] sm:$0xff]
  %v166 = vld [vmem:[%s2 + $0x70] sm:$0xff]
  %v167 = vld [vmem:[%s2 + $0x78] sm:$0xff]
  %169 = vset.pattern.permute.xlu0 0
  %170 = vperm.xlu0 %169, %v136
  %v171 = vpop.permute.xlu0 %170
  %174 = vset.pattern.permute.xlu0 0
  %175 = vperm.xlu0 %174, %v137
  %v176 = vpop.permute.xlu0 %175
  %179 = vset.pattern.permute.xlu0 0
  %180 = vperm.xlu0 %179, %v138
  %v181 = vpop.permute.xlu0 %180
  %184 = vset.pattern.permute.xlu0 0
  %185 = vperm.xlu0 %184, %v139
  %v186 = vpop.permute.xlu0 %185
  %189 = vset.pattern.permute.xlu0 0
  %190 = vperm.xlu0 %189, %v140
  %v191 = vpop.permute.xlu0 %190
  %194 = vset.pattern.permute.xlu0 0
  %195 = vperm.xlu0 %194, %v141
  %v196 = vpop.permute.xlu0 %195
  %199 = vset.pattern.permute.xlu0 0
  %200 = vperm.xlu0 %199, %v142
  %v201 = vpop.permute.xlu0 %200
  %204 = vset.pattern.permute.xlu0 0
  %205 = vperm.xlu0 %204, %v143
  %v206 = vpop.permute.xlu0 %205
  %209 = vset.pattern.permute.xlu0 0
  %210 = vperm.xlu0 %209, %v144
  %v211 = vpop.permute.xlu0 %210
  %214 = vset.pattern.permute.xlu0 0
  %215 = vperm.xlu0 %214, %v145
  %v216 = vpop.permute.xlu0 %215
  %219 = vset.pattern.permute.xlu0 0
  %220 = vperm.xlu0 %219, %v146
  %v221 = vpop.permute.xlu0 %220
  %224 = vset.pattern.permute.xlu0 0
  %225 = vperm.xlu0 %224, %v147
  %v226 = vpop.permute.xlu0 %225
  %229 = vset.pattern.permute.xlu0 0
  %230 = vperm.xlu0 %229, %v148
  %v231 = vpop.permute.xlu0 %230
  %234 = vset.pattern.permute.xlu0 0
  %235 = vperm.xlu0 %234, %v149
  %v236 = vpop.permute.xlu0 %235
  %239 = vset.pattern.permute.xlu0 0
  %240 = vperm.xlu0 %239, %v150
  %v241 = vpop.permute.xlu0 %240
  %244 = vset.pattern.permute.xlu0 0
  %245 = vperm.xlu0 %244, %v151
  %v246 = vpop.permute.xlu0 %245
  %v248 = vmul.f32 %v152, %v171
  %v249 = vmul.f32 %v153, %v176
  %v250 = vmul.f32 %v154, %v181
  %v251 = vmul.f32 %v155, %v186
  %v252 = vmul.f32 %v156, %v191
  %v253 = vmul.f32 %v157, %v196
  %v254 = vmul.f32 %v158, %v201
  %v255 = vmul.f32 %v159, %v206
  %v256 = vmul.f32 %v160, %v211
  %v257 = vmul.f32 %v161, %v216
  %v258 = vmul.f32 %v162, %v221
  %v259 = vmul.f32 %v163, %v226
  %v260 = vmul.f32 %v164, %v231
  %v261 = vmul.f32 %v165, %v236
  %v262 = vmul.f32 %v166, %v241
  %v263 = vmul.f32 %v167, %v246
  %vm264 = vcmask 64512
  %265 = vst.msk [vmem:[#allocation2] sm:$0xff] %vm264, 0.0
  %vm266 = vcmask 58368
  %267 = vst.msk [vmem:[#allocation2 + $0x8] sm:$0x3] %vm266, 0.0
  %268 = vst.msk [vmem:[#allocation2 + $0x10] sm:$0xff] %vm264, 0.0
  %269 = vst.msk [vmem:[#allocation2 + $0x18] sm:$0x3] %vm266, 0.0
  %270 = vst.msk [vmem:[#allocation2 + $0x20] sm:$0xff] %vm264, 0.0
  %271 = vst.msk [vmem:[#allocation2 + $0x28] sm:$0x3] %vm266, 0.0
  %272 = vst.msk [vmem:[#allocation2 + $0x30] sm:$0xff] %vm264, 0.0
  %273 = vst.msk [vmem:[#allocation2 + $0x38] sm:$0x3] %vm266, 0.0
  %274 = vst.msk [vmem:[#allocation2 + $0x40] sm:$0xff] %vm264, 0.0
  %275 = vst.msk [vmem:[#allocation2 + $0x48] sm:$0x3] %vm266, 0.0
  %276 = vst.msk [vmem:[#allocation2 + $0x50] sm:$0xff] %vm264, 0.0
  %277 = vst.msk [vmem:[#allocation2 + $0x58] sm:$0x3] %vm266, 0.0
  %278 = vst.msk [vmem:[#allocation2 + $0x60] sm:$0xff] %vm264, 0.0
  %279 = vst.msk [vmem:[#allocation2 + $0x68] sm:$0x3] %vm266, 0.0
  %280 = vst.msk [vmem:[#allocation2 + $0x70] sm:$0xff] %vm264, 0.0
  %281 = vst.msk [vmem:[#allocation2 + $0x78] sm:$0x3] %vm266, 0.0
  %282 = vst.msk [vmem:[#allocation2 + $0x80] sm:$0xff] %vm264, 0.0
  %283 = vst.msk [vmem:[#allocation2 + $0x88] sm:$0x3] %vm266, 0.0
  %284 = vst.msk [vmem:[#allocation2 + $0x90] sm:$0xff] %vm264, 0.0
  %285 = vst.msk [vmem:[#allocation2 + $0x98] sm:$0x3] %vm266, 0.0
  %286 = vst.msk [vmem:[#allocation2 + $0xa0] sm:$0xff] %vm264, 0.0
  %287 = vst.msk [vmem:[#allocation2 + $0xa8] sm:$0x3] %vm266, 0.0
  %288 = vst.msk [vmem:[#allocation2 + $0xb0] sm:$0xff] %vm264, 0.0
  %289 = vst.msk [vmem:[#allocation2 + $0xb8] sm:$0x3] %vm266, 0.0
  %290 = vst.msk [vmem:[#allocation2 + $0xc0] sm:$0xff] %vm264, 0.0
  %291 = vst.msk [vmem:[#allocation2 + $0xc8] sm:$0x3] %vm266, 0.0
  %292 = vst.msk [vmem:[#allocation2 + $0xd0] sm:$0xff] %vm264, 0.0
  %293 = vst.msk [vmem:[#allocation2 + $0xd8] sm:$0x3] %vm266, 0.0
  %294 = vst.msk [vmem:[#allocation2 + $0xe0] sm:$0xff] %vm264, 0.0
  %295 = vst.msk [vmem:[#allocation2 + $0xe8] sm:$0x3] %vm266, 0.0
  %296 = vst.msk [vmem:[#allocation2 + $0xf0] sm:$0xff] %vm264, 0.0
  %297 = vst.msk [vmem:[#allocation2 + $0xf8] sm:$0x3] %vm266, 0.0
  %298 = vst.msk [vmem:[#allocation2 + $0x100] sm:$0xff] %vm264, 0.0
  %299 = vst.msk [vmem:[#allocation2 + $0x108] sm:$0x3] %vm266, 0.0
  %300 = vst.msk [vmem:[#allocation2 + $0x110] sm:$0xff] %vm264, 0.0
  %301 = vst.msk [vmem:[#allocation2 + $0x118] sm:$0x3] %vm266, 0.0
  %302 = vst.msk [vmem:[#allocation2 + $0x120] sm:$0xff] %vm264, 0.0
  %303 = vst.msk [vmem:[#allocation2 + $0x128] sm:$0x3] %vm266, 0.0
  %304 = vst.msk [vmem:[#allocation2 + $0x130] sm:$0xff] %vm264, 0.0
  %305 = vst.msk [vmem:[#allocation2 + $0x138] sm:$0x3] %vm266, 0.0
  %s306 = scalar_lea.vmem [#allocation2], 16
  %307 = vst.msk [vmem:[%s306 + $0x1] sm:$0xff] %vm264, %v248
  %308 = vst.msk [vmem:[%s306 + $0x11] sm:$0xff] %vm264, %v249
  %309 = vst.msk [vmem:[%s306 + $0x21] sm:$0xff] %vm264, %v250
  %310 = vst.msk [vmem:[%s306 + $0x31] sm:$0xff] %vm264, %v251
  %311 = vst.msk [vmem:[%s306 + $0x41] sm:$0xff] %vm264, %v252
  %312 = vst.msk [vmem:[%s306 + $0x51] sm:$0xff] %vm264, %v253
  %313 = vst.msk [vmem:[%s306 + $0x61] sm:$0xff] %vm264, %v254
  %314 = vst.msk [vmem:[%s306 + $0x71] sm:$0xff] %vm264, %v255
  %315 = vst.msk [vmem:[%s306 + $0xa1] sm:$0xff] %vm264, %v256
  %316 = vst.msk [vmem:[%s306 + $0xb1] sm:$0xff] %vm264, %v257
  %317 = vst.msk [vmem:[%s306 + $0xc1] sm:$0xff] %vm264, %v258
  %318 = vst.msk [vmem:[%s306 + $0xd1] sm:$0xff] %vm264, %v259
  %319 = vst.msk [vmem:[%s306 + $0xe1] sm:$0xff] %vm264, %v260
  %320 = vst.msk [vmem:[%s306 + $0xf1] sm:$0xff] %vm264, %v261
  %321 = vst.msk [vmem:[%s306 + $0x101] sm:$0xff] %vm264, %v262
  %322 = vst.msk [vmem:[%s306 + $0x111] sm:$0xff] %vm264, %v263
  %v323 = vld [vmem:[#allocation2] sm:$0xff]
  %v324 = vld [vmem:[#allocation2 + $0x8] sm:$0x3]
  %v325 = vld [vmem:[#allocation2 + $0x10] sm:$0xff]
  %v326 = vld [vmem:[#allocation2 + $0x18] sm:$0x3]
  %v327 = vld [vmem:[#allocation2 + $0x20] sm:$0xff]
  %v328 = vld [vmem:[#allocation2 + $0x28] sm:$0x3]
  %v329 = vld [vmem:[#allocation2 + $0x30] sm:$0xff]
  %v330 = vld [vmem:[#allocation2 + $0x38] sm:$0x3]
  %v331 = vld [vmem:[#allocation2 + $0x40] sm:$0xff]
  %v332 = vld [vmem:[#allocation2 + $0x48] sm:$0x3]
  %v333 = vld [vmem:[#allocation2 + $0x50] sm:$0xff]
  %v334 = vld [vmem:[#allocation2 + $0x58] sm:$0x3]
  %v335 = vld [vmem:[#allocation2 + $0x60] sm:$0xff]
  %v336 = vld [vmem:[#allocation2 + $0x68] sm:$0x3]
  %v337 = vld [vmem:[#allocation2 + $0x70] sm:$0xff]
  %v338 = vld [vmem:[#allocation2 + $0x78] sm:$0x3]
  %v339 = vld [vmem:[#allocation2 + $0x80] sm:$0xff]
  %v340 = vld [vmem:[#allocation2 + $0x88] sm:$0x3]
  %v341 = vld [vmem:[#allocation2 + $0x90] sm:$0xff]
  %v342 = vld [vmem:[#allocation2 + $0x98] sm:$0x3]
  %v343 = vld [vmem:[#allocation2 + $0xa0] sm:$0xff]
  %v344 = vld [vmem:[#allocation2 + $0xa8] sm:$0x3]
  %v345 = vld [vmem:[#allocation2 + $0xb0] sm:$0xff]
  %v346 = vld [vmem:[#allocation2 + $0xb8] sm:$0x3]
  %v347 = vld [vmem:[#allocation2 + $0xc0] sm:$0xff]
  %v348 = vld [vmem:[#allocation2 + $0xc8] sm:$0x3]
  %v349 = vld [vmem:[#allocation2 + $0xd0] sm:$0xff]
  %v350 = vld [vmem:[#allocation2 + $0xd8] sm:$0x3]
  %v351 = vld [vmem:[#allocation2 + $0xe0] sm:$0xff]
  %v352 = vld [vmem:[#allocation2 + $0xe8] sm:$0x3]
  %v353 = vld [vmem:[#allocation2 + $0xf0] sm:$0xff]
  %v354 = vld [vmem:[#allocation2 + $0xf8] sm:$0x3]
  %v355 = vld [vmem:[#allocation2 + $0x100] sm:$0xff]
  %v356 = vld [vmem:[#allocation2 + $0x108] sm:$0x3]
  %v357 = vld [vmem:[#allocation2 + $0x110] sm:$0xff]
  %v358 = vld [vmem:[#allocation2 + $0x118] sm:$0x3]
  %v359 = vld [vmem:[#allocation2 + $0x120] sm:$0xff]
  %v360 = vld [vmem:[#allocation2 + $0x128] sm:$0x3]
  %v361 = vld [vmem:[#allocation2 + $0x130] sm:$0xff]
  %v362 = vld [vmem:[#allocation2 + $0x138] sm:$0x3]
  %v363 = vld [vmem:[%s3] sm:$0x7]
  %v364 = vld [vmem:[%s3 + $0x4] sm:$0x7]
  %v365 = vld [vmem:[%s3 + $0x8] sm:$0x7]
  %v366 = vlaneseq
  %v367 = vshrl.u32 %v366, 7
  %v368 = vsub.s32 0, %v367
  %v369 = vrot.slane %v363, %v368
  %v370 = vmul.f32 %v323, %v369
  %v371 = vmul.f32 %v325, %v369
  %v372 = vmul.f32 %v327, %v369
  %v373 = vmul.f32 %v329, %v369
  %v374 = vmul.f32 %v331, %v369
  %v375 = vmul.f32 %v333, %v369
  %v376 = vmul.f32 %v335, %v369
  %v377 = vmul.f32 %v337, %v369
  %v378 = vmul.f32 %v343, %v369
  %v379 = vmul.f32 %v345, %v369
  %v380 = vmul.f32 %v347, %v369
  %v381 = vmul.f32 %v349, %v369
  %v382 = vmul.f32 %v351, %v369
  %v383 = vmul.f32 %v353, %v369
  %v384 = vmul.f32 %v355, %v369
  %v385 = vmul.f32 %v357, %v369
  %v386 = vadd.f32 %v370, 0.0
  %v387 = vadd.f32 %v371, 0.0
  %v388 = vadd.f32 %v372, 0.0
  %v389 = vadd.f32 %v373, 0.0
  %v390 = vadd.f32 %v374, 0.0
  %v391 = vadd.f32 %v375, 0.0
  %v392 = vadd.f32 %v376, 0.0
  %v393 = vadd.f32 %v377, 0.0
  %v394 = vadd.f32 %v378, 0.0
  %v395 = vadd.f32 %v379, 0.0
  %v396 = vadd.f32 %v380, 0.0
  %v397 = vadd.f32 %v381, 0.0
  %v398 = vadd.f32 %v382, 0.0
  %v399 = vadd.f32 %v383, 0.0
  %v400 = vadd.f32 %v384, 0.0
  %v401 = vadd.f32 %v385, 0.0
  %v402 = vlaneseq
  %v403 = vshrl.u32 %v402, 7
  %v404 = vsub.s32 1, %v403
  %v405 = vrot.slane %v363, %v404
  %v406 = vmul.f32 %v323, %v405
  %v407 = vmul.f32 %v324, %v405
  %v408 = vmul.f32 %v325, %v405
  %v409 = vmul.f32 %v326, %v405
  %v410 = vmul.f32 %v327, %v405
  %v411 = vmul.f32 %v328, %v405
  %v412 = vmul.f32 %v329, %v405
  %v413 = vmul.f32 %v330, %v405
  %v414 = vmul.f32 %v331, %v405
  %v415 = vmul.f32 %v332, %v405
  %v416 = vmul.f32 %v333, %v405
  %v417 = vmul.f32 %v334, %v405
  %v418 = vmul.f32 %v335, %v405
  %v419 = vmul.f32 %v336, %v405
  %v420 = vmul.f32 %v337, %v405
  %v421 = vmul.f32 %v338, %v405
  %v422 = vmul.f32 %v343, %v405
  %v423 = vmul.f32 %v344, %v405
  %v424 = vmul.f32 %v345, %v405
  %v425 = vmul.f32 %v346, %v405
  %v426 = vmul.f32 %v347, %v405
  %v427 = vmul.f32 %v348, %v405
  %v428 = vmul.f32 %v349, %v405
  %v429 = vmul.f32 %v350, %v405
  %v430 = vmul.f32 %v351, %v405
  %v431 = vmul.f32 %v352, %v405
  %v432 = vmul.f32 %v353, %v405
  %v433 = vmul.f32 %v354, %v405
  %v434 = vmul.f32 %v355, %v405
  %v435 = vmul.f32 %v356, %v405
  %v436 = vmul.f32 %v357, %v405
  %v437 = vmul.f32 %v358, %v405
  %vm470 = vcmask 1046528
  %v471 = vrot.slane %v406, 1
  %v472 = vrot.slane %v407, 1
  %v473 = vsel %vm470, %v471, %v472
  %v474 = vrot.slane %v408, 1
  %v475 = vrot.slane %v409, 1
  %v476 = vsel %vm470, %v474, %v475
  %v477 = vrot.slane %v410, 1
  %v478 = vrot.slane %v411, 1
  %v479 = vsel %vm470, %v477, %v478
  %v480 = vrot.slane %v412, 1
  %v481 = vrot.slane %v413, 1
  %v482 = vsel %vm470, %v480, %v481
  %v483 = vrot.slane %v414, 1
  %v484 = vrot.slane %v415, 1
  %v485 = vsel %vm470, %v483, %v484
  %v486 = vrot.slane %v416, 1
  %v487 = vrot.slane %v417, 1
  %v488 = vsel %vm470, %v486, %v487
  %v489 = vrot.slane %v418, 1
  %v490 = vrot.slane %v419, 1
  %v491 = vsel %vm470, %v489, %v490
  %v492 = vrot.slane %v420, 1
  %v493 = vrot.slane %v421, 1
  %v494 = vsel %vm470, %v492, %v493
  %v495 = vrot.slane %v422, 1
  %v496 = vrot.slane %v423, 1
  %v497 = vsel %vm470, %v495, %v496
  %v498 = vrot.slane %v424, 1
  %v499 = vrot.slane %v425, 1
  %v500 = vsel %vm470, %v498, %v499
  %v501 = vrot.slane %v426, 1
  %v502 = vrot.slane %v427, 1
  %v503 = vsel %vm470, %v501, %v502
  %v504 = vrot.slane %v428, 1
  %v505 = vrot.slane %v429, 1
  %v506 = vsel %vm470, %v504, %v505
  %v507 = vrot.slane %v430, 1
  %v508 = vrot.slane %v431, 1
  %v509 = vsel %vm470, %v507, %v508
  %v510 = vrot.slane %v432, 1
  %v511 = vrot.slane %v433, 1
  %v512 = vsel %vm470, %v510, %v511
  %v513 = vrot.slane %v434, 1
  %v514 = vrot.slane %v435, 1
  %v515 = vsel %vm470, %v513, %v514
  %v516 = vrot.slane %v436, 1
  %v517 = vrot.slane %v437, 1
  %v518 = vsel %vm470, %v516, %v517
  %v535 = vadd.f32 %v386, %v473
  %v536 = vadd.f32 %v387, %v476
  %v537 = vadd.f32 %v388, %v479
  %v538 = vadd.f32 %v389, %v482
  %v539 = vadd.f32 %v390, %v485
  %v540 = vadd.f32 %v391, %v488
  %v541 = vadd.f32 %v392, %v491
  %v542 = vadd.f32 %v393, %v494
  %v543 = vadd.f32 %v394, %v497
  %v544 = vadd.f32 %v395, %v500
  %v545 = vadd.f32 %v396, %v503
  %v546 = vadd.f32 %v397, %v506
  %v547 = vadd.f32 %v398, %v509
  %v548 = vadd.f32 %v399, %v512
  %v549 = vadd.f32 %v400, %v515
  %v550 = vadd.f32 %v401, %v518
  %v551 = vlaneseq
  %v552 = vshrl.u32 %v551, 7
  %v553 = vsub.s32 2, %v552
  %v554 = vrot.slane %v363, %v553
  %v555 = vmul.f32 %v323, %v554
  %v556 = vmul.f32 %v324, %v554
  %v557 = vmul.f32 %v325, %v554
  %v558 = vmul.f32 %v326, %v554
  %v559 = vmul.f32 %v327, %v554
  %v560 = vmul.f32 %v328, %v554
  %v561 = vmul.f32 %v329, %v554
  %v562 = vmul.f32 %v330, %v554
  %v563 = vmul.f32 %v331, %v554
  %v564 = vmul.f32 %v332, %v554
  %v565 = vmul.f32 %v333, %v554
  %v566 = vmul.f32 %v334, %v554
  %v567 = vmul.f32 %v335, %v554
  %v568 = vmul.f32 %v336, %v554
  %v569 = vmul.f32 %v337, %v554
  %v570 = vmul.f32 %v338, %v554
  %v571 = vmul.f32 %v343, %v554
  %v572 = vmul.f32 %v344, %v554
  %v573 = vmul.f32 %v345, %v554
  %v574 = vmul.f32 %v346, %v554
  %v575 = vmul.f32 %v347, %v554
  %v576 = vmul.f32 %v348, %v554
  %v577 = vmul.f32 %v349, %v554
  %v578 = vmul.f32 %v350, %v554
  %v579 = vmul.f32 %v351, %v554
  %v580 = vmul.f32 %v352, %v554
  %v581 = vmul.f32 %v353, %v554
  %v582 = vmul.f32 %v354, %v554
  %v583 = vmul.f32 %v355, %v554
  %v584 = vmul.f32 %v356, %v554
  %v585 = vmul.f32 %v357, %v554
  %v586 = vmul.f32 %v358, %v554
  %vm619 = vcmask 1045504
  %v620 = vrot.slane %v555, 2
  %v621 = vrot.slane %v556, 2
  %v622 = vsel %vm619, %v620, %v621
  %v623 = vrot.slane %v557, 2
  %v624 = vrot.slane %v558, 2
  %v625 = vsel %vm619, %v623, %v624
  %v626 = vrot.slane %v559, 2
  %v627 = vrot.slane %v560, 2
  %v628 = vsel %vm619, %v626, %v627
  %v629 = vrot.slane %v561, 2
  %v630 = vrot.slane %v562, 2
  %v631 = vsel %vm619, %v629, %v630
  %v632 = vrot.slane %v563, 2
  %v633 = vrot.slane %v564, 2
  %v634 = vsel %vm619, %v632, %v633
  %v635 = vrot.slane %v565, 2
  %v636 = vrot.slane %v566, 2
  %v637 = vsel %vm619, %v635, %v636
  %v638 = vrot.slane %v567, 2
  %v639 = vrot.slane %v568, 2
  %v640 = vsel %vm619, %v638, %v639
  %v641 = vrot.slane %v569, 2
  %v642 = vrot.slane %v570, 2
  %v643 = vsel %vm619, %v641, %v642
  %v644 = vrot.slane %v571, 2
  %v645 = vrot.slane %v572, 2
  %v646 = vsel %vm619, %v644, %v645
  %v647 = vrot.slane %v573, 2
  %v648 = vrot.slane %v574, 2
  %v649 = vsel %vm619, %v647, %v648
  %v650 = vrot.slane %v575, 2
  %v651 = vrot.slane %v576, 2
  %v652 = vsel %vm619, %v650, %v651
  %v653 = vrot.slane %v577, 2
  %v654 = vrot.slane %v578, 2
  %v655 = vsel %vm619, %v653, %v654
  %v656 = vrot.slane %v579, 2
  %v657 = vrot.slane %v580, 2
  %v658 = vsel %vm619, %v656, %v657
  %v659 = vrot.slane %v581, 2
  %v660 = vrot.slane %v582, 2
  %v661 = vsel %vm619, %v659, %v660
  %v662 = vrot.slane %v583, 2
  %v663 = vrot.slane %v584, 2
  %v664 = vsel %vm619, %v662, %v663
  %v665 = vrot.slane %v585, 2
  %v666 = vrot.slane %v586, 2
  %v667 = vsel %vm619, %v665, %v666
  %v684 = vadd.f32 %v535, %v622
  %v685 = vadd.f32 %v536, %v625
  %v686 = vadd.f32 %v537, %v628
  %v687 = vadd.f32 %v538, %v631
  %v688 = vadd.f32 %v539, %v634
  %v689 = vadd.f32 %v540, %v637
  %v690 = vadd.f32 %v541, %v640
  %v691 = vadd.f32 %v542, %v643
  %v692 = vadd.f32 %v543, %v646
  %v693 = vadd.f32 %v544, %v649
  %v694 = vadd.f32 %v545, %v652
  %v695 = vadd.f32 %v546, %v655
  %v696 = vadd.f32 %v547, %v658
  %v697 = vadd.f32 %v548, %v661
  %v698 = vadd.f32 %v549, %v664
  %v699 = vadd.f32 %v550, %v667
  %v700 = vlaneseq
  %v701 = vshrl.u32 %v700, 7
  %v702 = vsub.s32 0, %v701
  %v703 = vrot.slane %v364, %v702
  %v704 = vmul.f32 %v325, %v703
  %v705 = vmul.f32 %v327, %v703
  %v706 = vmul.f32 %v329, %v703
  %v707 = vmul.f32 %v331, %v703
  %v708 = vmul.f32 %v333, %v703
  %v709 = vmul.f32 %v335, %v703
  %v710 = vmul.f32 %v337, %v703
  %v711 = vmul.f32 %v339, %v703
  %v712 = vmul.f32 %v345, %v703
  %v713 = vmul.f32 %v347, %v703
  %v714 = vmul.f32 %v349, %v703
  %v715 = vmul.f32 %v351, %v703
  %v716 = vmul.f32 %v353, %v703
  %v717 = vmul.f32 %v355, %v703
  %v718 = vmul.f32 %v357, %v703
  %v719 = vmul.f32 %v359, %v703
  %v720 = vadd.f32 %v684, %v704
  %v721 = vadd.f32 %v685, %v705
  %v722 = vadd.f32 %v686, %v706
  %v723 = vadd.f32 %v687, %v707
  %v724 = vadd.f32 %v688, %v708
  %v725 = vadd.f32 %v689, %v709
  %v726 = vadd.f32 %v690, %v710
  %v727 = vadd.f32 %v691, %v711
  %v728 = vadd.f32 %v692, %v712
  %v729 = vadd.f32 %v693, %v713
  %v730 = vadd.f32 %v694, %v714
  %v731 = vadd.f32 %v695, %v715
  %v732 = vadd.f32 %v696, %v716
  %v733 = vadd.f32 %v697, %v717
  %v734 = vadd.f32 %v698, %v718
  %v735 = vadd.f32 %v699, %v719
  %v736 = vlaneseq
  %v737 = vshrl.u32 %v736, 7
  %v738 = vsub.s32 1, %v737
  %v739 = vrot.slane %v364, %v738
  %v740 = vmul.f32 %v325, %v739
  %v741 = vmul.f32 %v326, %v739
  %v742 = vmul.f32 %v327, %v739
  %v743 = vmul.f32 %v328, %v739
  %v744 = vmul.f32 %v329, %v739
  %v745 = vmul.f32 %v330, %v739
  %v746 = vmul.f32 %v331, %v739
  %v747 = vmul.f32 %v332, %v739
  %v748 = vmul.f32 %v333, %v739
  %v749 = vmul.f32 %v334, %v739
  %v750 = vmul.f32 %v335, %v739
  %v751 = vmul.f32 %v336, %v739
  %v752 = vmul.f32 %v337, %v739
  %v753 = vmul.f32 %v338, %v739
  %v754 = vmul.f32 %v339, %v739
  %v755 = vmul.f32 %v340, %v739
  %v756 = vmul.f32 %v345, %v739
  %v757 = vmul.f32 %v346, %v739
  %v758 = vmul.f32 %v347, %v739
  %v759 = vmul.f32 %v348, %v739
  %v760 = vmul.f32 %v349, %v739
  %v761 = vmul.f32 %v350, %v739
  %v762 = vmul.f32 %v351, %v739
  %v763 = vmul.f32 %v352, %v739
  %v764 = vmul.f32 %v353, %v739
  %v765 = vmul.f32 %v354, %v739
  %v766 = vmul.f32 %v355, %v739
  %v767 = vmul.f32 %v356, %v739
  %v768 = vmul.f32 %v357, %v739
  %v769 = vmul.f32 %v358, %v739
  %v770 = vmul.f32 %v359, %v739
  %v771 = vmul.f32 %v360, %v739
  %v804 = vrot.slane %v740, 1
  %v805 = vrot.slane %v741, 1
  %v806 = vsel %vm470, %v804, %v805
  %v807 = vrot.slane %v742, 1
  %v808 = vrot.slane %v743, 1
  %v809 = vsel %vm470, %v807, %v808
  %v810 = vrot.slane %v744, 1
  %v811 = vrot.slane %v745, 1
  %v812 = vsel %vm470, %v810, %v811
  %v813 = vrot.slane %v746, 1
  %v814 = vrot.slane %v747, 1
  %v815 = vsel %vm470, %v813, %v814
  %v816 = vrot.slane %v748, 1
  %v817 = vrot.slane %v749, 1
  %v818 = vsel %vm470, %v816, %v817
  %v819 = vrot.slane %v750, 1
  %v820 = vrot.slane %v751, 1
  %v821 = vsel %vm470, %v819, %v820
  %v822 = vrot.slane %v752, 1
  %v823 = vrot.slane %v753, 1
  %v824 = vsel %vm470, %v822, %v823
  %v825 = vrot.slane %v754, 1
  %v826 = vrot.slane %v755, 1
  %v827 = vsel %vm470, %v825, %v826
  %v828 = vrot.slane %v756, 1
  %v829 = vrot.slane %v757, 1
  %v830 = vsel %vm470, %v828, %v829
  %v831 = vrot.slane %v758, 1
  %v832 = vrot.slane %v759, 1
  %v833 = vsel %vm470, %v831, %v832
  %v834 = vrot.slane %v760, 1
  %v835 = vrot.slane %v761, 1
  %v836 = vsel %vm470, %v834, %v835
  %v837 = vrot.slane %v762, 1
  %v838 = vrot.slane %v763, 1
  %v839 = vsel %vm470, %v837, %v838
  %v840 = vrot.slane %v764, 1
  %v841 = vrot.slane %v765, 1
  %v842 = vsel %vm470, %v840, %v841
  %v843 = vrot.slane %v766, 1
  %v844 = vrot.slane %v767, 1
  %v845 = vsel %vm470, %v843, %v844
  %v846 = vrot.slane %v768, 1
  %v847 = vrot.slane %v769, 1
  %v848 = vsel %vm470, %v846, %v847
  %v849 = vrot.slane %v770, 1
  %v850 = vrot.slane %v771, 1
  %v851 = vsel %vm470, %v849, %v850
  %v868 = vadd.f32 %v720, %v806
  %v869 = vadd.f32 %v721, %v809
  %v870 = vadd.f32 %v722, %v812
  %v871 = vadd.f32 %v723, %v815
  %v872 = vadd.f32 %v724, %v818
  %v873 = vadd.f32 %v725, %v821
  %v874 = vadd.f32 %v726, %v824
  %v875 = vadd.f32 %v727, %v827
  %v876 = vadd.f32 %v728, %v830
  %v877 = vadd.f32 %v729, %v833
  %v878 = vadd.f32 %v730, %v836
  %v879 = vadd.f32 %v731, %v839
  %v880 = vadd.f32 %v732, %v842
  %v881 = vadd.f32 %v733, %v845
  %v882 = vadd.f32 %v734, %v848
  %v883 = vadd.f32 %v735, %v851
  %v884 = vlaneseq
  %v885 = vshrl.u32 %v884, 7
  %v886 = vsub.s32 2, %v885
  %v887 = vrot.slane %v364, %v886
  %v888 = vmul.f32 %v325, %v887
  %v889 = vmul.f32 %v326, %v887
  %v890 = vmul.f32 %v327, %v887
  %v891 = vmul.f32 %v328, %v887
  %v892 = vmul.f32 %v329, %v887
  %v893 = vmul.f32 %v330, %v887
  %v894 = vmul.f32 %v331, %v887
  %v895 = vmul.f32 %v332, %v887
  %v896 = vmul.f32 %v333, %v887
  %v897 = vmul.f32 %v334, %v887
  %v898 = vmul.f32 %v335, %v887
  %v899 = vmul.f32 %v336, %v887
  %v900 = vmul.f32 %v337, %v887
  %v901 = vmul.f32 %v338, %v887
  %v902 = vmul.f32 %v339, %v887
  %v903 = vmul.f32 %v340, %v887
  %v904 = vmul.f32 %v345, %v887
  %v905 = vmul.f32 %v346, %v887
  %v906 = vmul.f32 %v347, %v887
  %v907 = vmul.f32 %v348, %v887
  %v908 = vmul.f32 %v349, %v887
  %v909 = vmul.f32 %v350, %v887
  %v910 = vmul.f32 %v351, %v887
  %v911 = vmul.f32 %v352, %v887
  %v912 = vmul.f32 %v353, %v887
  %v913 = vmul.f32 %v354, %v887
  %v914 = vmul.f32 %v355, %v887
  %v915 = vmul.f32 %v356, %v887
  %v916 = vmul.f32 %v357, %v887
  %v917 = vmul.f32 %v358, %v887
  %v918 = vmul.f32 %v359, %v887
  %v919 = vmul.f32 %v360, %v887
  %v952 = vrot.slane %v888, 2
  %v953 = vrot.slane %v889, 2
  %v954 = vsel %vm619, %v952, %v953
  %v955 = vrot.slane %v890, 2
  %v956 = vrot.slane %v891, 2
  %v957 = vsel %vm619, %v955, %v956
  %v958 = vrot.slane %v892, 2
  %v959 = vrot.slane %v893, 2
  %v960 = vsel %vm619, %v958, %v959
  %v961 = vrot.slane %v894, 2
  %v962 = vrot.slane %v895, 2
  %v963 = vsel %vm619, %v961, %v962
  %v964 = vrot.slane %v896, 2
  %v965 = vrot.slane %v897, 2
  %v966 = vsel %vm619, %v964, %v965
  %v967 = vrot.slane %v898, 2
  %v968 = vrot.slane %v899, 2
  %v969 = vsel %vm619, %v967, %v968
  %v970 = vrot.slane %v900, 2
  %v971 = vrot.slane %v901, 2
  %v972 = vsel %vm619, %v970, %v971
  %v973 = vrot.slane %v902, 2
  %v974 = vrot.slane %v903, 2
  %v975 = vsel %vm619, %v973, %v974
  %v976 = vrot.slane %v904, 2
  %v977 = vrot.slane %v905, 2
  %v978 = vsel %vm619, %v976, %v977
  %v979 = vrot.slane %v906, 2
  %v980 = vrot.slane %v907, 2
  %v981 = vsel %vm619, %v979, %v980
  %v982 = vrot.slane %v908, 2
  %v983 = vrot.slane %v909, 2
  %v984 = vsel %vm619, %v982, %v983
  %v985 = vrot.slane %v910, 2
  %v986 = vrot.slane %v911, 2
  %v987 = vsel %vm619, %v985, %v986
  %v988 = vrot.slane %v912, 2
  %v989 = vrot.slane %v913, 2
  %v990 = vsel %vm619, %v988, %v989
  %v991 = vrot.slane %v914, 2
  %v992 = vrot.slane %v915, 2
  %v993 = vsel %vm619, %v991, %v992
  %v994 = vrot.slane %v916, 2
  %v995 = vrot.slane %v917, 2
  %v996 = vsel %vm619, %v994, %v995
  %v997 = vrot.slane %v918, 2
  %v998 = vrot.slane %v919, 2
  %v999 = vsel %vm619, %v997, %v998
  %v1016 = vadd.f32 %v868, %v954
  %v1017 = vadd.f32 %v869, %v957
  %v1018 = vadd.f32 %v870, %v960
  %v1019 = vadd.f32 %v871, %v963
  %v1020 = vadd.f32 %v872, %v966
  %v1021 = vadd.f32 %v873, %v969
  %v1022 = vadd.f32 %v874, %v972
  %v1023 = vadd.f32 %v875, %v975
  %v1024 = vadd.f32 %v876, %v978
  %v1025 = vadd.f32 %v877, %v981
  %v1026 = vadd.f32 %v878, %v984
  %v1027 = vadd.f32 %v879, %v987
  %v1028 = vadd.f32 %v880, %v990
  %v1029 = vadd.f32 %v881, %v993
  %v1030 = vadd.f32 %v882, %v996
  %v1031 = vadd.f32 %v883, %v999
  %v1032 = vlaneseq
  %v1033 = vshrl.u32 %v1032, 7
  %v1034 = vsub.s32 0, %v1033
  %v1035 = vrot.slane %v365, %v1034
  %v1036 = vmul.f32 %v327, %v1035
  %v1037 = vmul.f32 %v329, %v1035
  %v1038 = vmul.f32 %v331, %v1035
  %v1039 = vmul.f32 %v333, %v1035
  %v1040 = vmul.f32 %v335, %v1035
  %v1041 = vmul.f32 %v337, %v1035
  %v1042 = vmul.f32 %v339, %v1035
  %v1043 = vmul.f32 %v341, %v1035
  %v1044 = vmul.f32 %v347, %v1035
  %v1045 = vmul.f32 %v349, %v1035
  %v1046 = vmul.f32 %v351, %v1035
  %v1047 = vmul.f32 %v353, %v1035
  %v1048 = vmul.f32 %v355, %v1035
  %v1049 = vmul.f32 %v357, %v1035
  %v1050 = vmul.f32 %v359, %v1035
  %v1051 = vmul.f32 %v361, %v1035
  %v1052 = vadd.f32 %v1016, %v1036
  %v1053 = vadd.f32 %v1017, %v1037
  %v1054 = vadd.f32 %v1018, %v1038
  %v1055 = vadd.f32 %v1019, %v1039
  %v1056 = vadd.f32 %v1020, %v1040
  %v1057 = vadd.f32 %v1021, %v1041
  %v1058 = vadd.f32 %v1022, %v1042
  %v1059 = vadd.f32 %v1023, %v1043
  %v1060 = vadd.f32 %v1024, %v1044
  %v1061 = vadd.f32 %v1025, %v1045
  %v1062 = vadd.f32 %v1026, %v1046
  %v1063 = vadd.f32 %v1027, %v1047
  %v1064 = vadd.f32 %v1028, %v1048
  %v1065 = vadd.f32 %v1029, %v1049
  %v1066 = vadd.f32 %v1030, %v1050
  %v1067 = vadd.f32 %v1031, %v1051
  %v1068 = vlaneseq
  %v1069 = vshrl.u32 %v1068, 7
  %v1070 = vsub.s32 1, %v1069
  %v1071 = vrot.slane %v365, %v1070
  %v1072 = vmul.f32 %v327, %v1071
  %v1073 = vmul.f32 %v328, %v1071
  %v1074 = vmul.f32 %v329, %v1071
  %v1075 = vmul.f32 %v330, %v1071
  %v1076 = vmul.f32 %v331, %v1071
  %v1077 = vmul.f32 %v332, %v1071
  %v1078 = vmul.f32 %v333, %v1071
  %v1079 = vmul.f32 %v334, %v1071
  %v1080 = vmul.f32 %v335, %v1071
  %v1081 = vmul.f32 %v336, %v1071
  %v1082 = vmul.f32 %v337, %v1071
  %v1083 = vmul.f32 %v338, %v1071
  %v1084 = vmul.f32 %v339, %v1071
  %v1085 = vmul.f32 %v340, %v1071
  %v1086 = vmul.f32 %v341, %v1071
  %v1087 = vmul.f32 %v342, %v1071
  %v1088 = vmul.f32 %v347, %v1071
  %v1089 = vmul.f32 %v348, %v1071
  %v1090 = vmul.f32 %v349, %v1071
  %v1091 = vmul.f32 %v350, %v1071
  %v1092 = vmul.f32 %v351, %v1071
  %v1093 = vmul.f32 %v352, %v1071
  %v1094 = vmul.f32 %v353, %v1071
  %v1095 = vmul.f32 %v354, %v1071
  %v1096 = vmul.f32 %v355, %v1071
  %v1097 = vmul.f32 %v356, %v1071
  %v1098 = vmul.f32 %v357, %v1071
  %v1099 = vmul.f32 %v358, %v1071
  %v1100 = vmul.f32 %v359, %v1071
  %v1101 = vmul.f32 %v360, %v1071
  %v1102 = vmul.f32 %v361, %v1071
  %v1103 = vmul.f32 %v362, %v1071
  %v1136 = vrot.slane %v1072, 1
  %v1137 = vrot.slane %v1073, 1
  %v1138 = vsel %vm470, %v1136, %v1137
  %v1139 = vrot.slane %v1074, 1
  %v1140 = vrot.slane %v1075, 1
  %v1141 = vsel %vm470, %v1139, %v1140
  %v1142 = vrot.slane %v1076, 1
  %v1143 = vrot.slane %v1077, 1
  %v1144 = vsel %vm470, %v1142, %v1143
  %v1145 = vrot.slane %v1078, 1
  %v1146 = vrot.slane %v1079, 1
  %v1147 = vsel %vm470, %v1145, %v1146
  %v1148 = vrot.slane %v1080, 1
  %v1149 = vrot.slane %v1081, 1
  %v1150 = vsel %vm470, %v1148, %v1149
  %v1151 = vrot.slane %v1082, 1
  %v1152 = vrot.slane %v1083, 1
  %v1153 = vsel %vm470, %v1151, %v1152
  %v1154 = vrot.slane %v1084, 1
  %v1155 = vrot.slane %v1085, 1
  %v1156 = vsel %vm470, %v1154, %v1155
  %v1157 = vrot.slane %v1086, 1
  %v1158 = vrot.slane %v1087, 1
  %v1159 = vsel %vm470, %v1157, %v1158
  %v1160 = vrot.slane %v1088, 1
  %v1161 = vrot.slane %v1089, 1
  %v1162 = vsel %vm470, %v1160, %v1161
  %v1163 = vrot.slane %v1090, 1
  %v1164 = vrot.slane %v1091, 1
  %v1165 = vsel %vm470, %v1163, %v1164
  %v1166 = vrot.slane %v1092, 1
  %v1167 = vrot.slane %v1093, 1
  %v1168 = vsel %vm470, %v1166, %v1167
  %v1169 = vrot.slane %v1094, 1
  %v1170 = vrot.slane %v1095, 1
  %v1171 = vsel %vm470, %v1169, %v1170
  %v1172 = vrot.slane %v1096, 1
  %v1173 = vrot.slane %v1097, 1
  %v1174 = vsel %vm470, %v1172, %v1173
  %v1175 = vrot.slane %v1098, 1
  %v1176 = vrot.slane %v1099, 1
  %v1177 = vsel %vm470, %v1175, %v1176
  %v1178 = vrot.slane %v1100, 1
  %v1179 = vrot.slane %v1101, 1
  %v1180 = vsel %vm470, %v1178, %v1179
  %v1181 = vrot.slane %v1102, 1
  %v1182 = vrot.slane %v1103, 1
  %v1183 = vsel %vm470, %v1181, %v1182
  %v1200 = vadd.f32 %v1052, %v1138
  %v1201 = vadd.f32 %v1053, %v1141
  %v1202 = vadd.f32 %v1054, %v1144
  %v1203 = vadd.f32 %v1055, %v1147
  %v1204 = vadd.f32 %v1056, %v1150
  %v1205 = vadd.f32 %v1057, %v1153
  %v1206 = vadd.f32 %v1058, %v1156
  %v1207 = vadd.f32 %v1059, %v1159
  %v1208 = vadd.f32 %v1060, %v1162
  %v1209 = vadd.f32 %v1061, %v1165
  %v1210 = vadd.f32 %v1062, %v1168
  %v1211 = vadd.f32 %v1063, %v1171
  %v1212 = vadd.f32 %v1064, %v1174
  %v1213 = vadd.f32 %v1065, %v1177
  %v1214 = vadd.f32 %v1066, %v1180
  %v1215 = vadd.f32 %v1067, %v1183
  %v1216 = vlaneseq
  %v1217 = vshrl.u32 %v1216, 7
  %v1218 = vsub.s32 2, %v1217
  %v1219 = vrot.slane %v365, %v1218
  %v1220 = vmul.f32 %v327, %v1219
  %v1221 = vmul.f32 %v328, %v1219
  %v1222 = vmul.f32 %v329, %v1219
  %v1223 = vmul.f32 %v330, %v1219
  %v1224 = vmul.f32 %v331, %v1219
  %v1225 = vmul.f32 %v332, %v1219
  %v1226 = vmul.f32 %v333, %v1219
  %v1227 = vmul.f32 %v334, %v1219
  %v1228 = vmul.f32 %v335, %v1219
  %v1229 = vmul.f32 %v336, %v1219
  %v1230 = vmul.f32 %v337, %v1219
  %v1231 = vmul.f32 %v338, %v1219
  %v1232 = vmul.f32 %v339, %v1219
  %v1233 = vmul.f32 %v340, %v1219
  %v1234 = vmul.f32 %v341, %v1219
  %v1235 = vmul.f32 %v342, %v1219
  %v1236 = vmul.f32 %v347, %v1219
  %v1237 = vmul.f32 %v348, %v1219
  %v1238 = vmul.f32 %v349, %v1219
  %v1239 = vmul.f32 %v350, %v1219
  %v1240 = vmul.f32 %v351, %v1219
  %v1241 = vmul.f32 %v352, %v1219
  %v1242 = vmul.f32 %v353, %v1219
  %v1243 = vmul.f32 %v354, %v1219
  %v1244 = vmul.f32 %v355, %v1219
  %v1245 = vmul.f32 %v356, %v1219
  %v1246 = vmul.f32 %v357, %v1219
  %v1247 = vmul.f32 %v358, %v1219
  %v1248 = vmul.f32 %v359, %v1219
  %v1249 = vmul.f32 %v360, %v1219
  %v1250 = vmul.f32 %v361, %v1219
  %v1251 = vmul.f32 %v362, %v1219
  %v1284 = vrot.slane %v1220, 2
  %v1285 = vrot.slane %v1221, 2
  %v1286 = vsel %vm619, %v1284, %v1285
  %v1287 = vrot.slane %v1222, 2
  %v1288 = vrot.slane %v1223, 2
  %v1289 = vsel %vm619, %v1287, %v1288
  %v1290 = vrot.slane %v1224, 2
  %v1291 = vrot.slane %v1225, 2
  %v1292 = vsel %vm619, %v1290, %v1291
  %v1293 = vrot.slane %v1226, 2
  %v1294 = vrot.slane %v1227, 2
  %v1295 = vsel %vm619, %v1293, %v1294
  %v1296 = vrot.slane %v1228, 2
  %v1297 = vrot.slane %v1229, 2
  %v1298 = vsel %vm619, %v1296, %v1297
  %v1299 = vrot.slane %v1230, 2
  %v1300 = vrot.slane %v1231, 2
  %v1301 = vsel %vm619, %v1299, %v1300
  %v1302 = vrot.slane %v1232, 2
  %v1303 = vrot.slane %v1233, 2
  %v1304 = vsel %vm619, %v1302, %v1303
  %v1305 = vrot.slane %v1234, 2
  %v1306 = vrot.slane %v1235, 2
  %v1307 = vsel %vm619, %v1305, %v1306
  %v1308 = vrot.slane %v1236, 2
  %v1309 = vrot.slane %v1237, 2
  %v1310 = vsel %vm619, %v1308, %v1309
  %v1311 = vrot.slane %v1238, 2
  %v1312 = vrot.slane %v1239, 2
  %v1313 = vsel %vm619, %v1311, %v1312
  %v1314 = vrot.slane %v1240, 2
  %v1315 = vrot.slane %v1241, 2
  %v1316 = vsel %vm619, %v1314, %v1315
  %v1317 = vrot.slane %v1242, 2
  %v1318 = vrot.slane %v1243, 2
  %v1319 = vsel %vm619, %v1317, %v1318
  %v1320 = vrot.slane %v1244, 2
  %v1321 = vrot.slane %v1245, 2
  %v1322 = vsel %vm619, %v1320, %v1321
  %v1323 = vrot.slane %v1246, 2
  %v1324 = vrot.slane %v1247, 2
  %v1325 = vsel %vm619, %v1323, %v1324
  %v1326 = vrot.slane %v1248, 2
  %v1327 = vrot.slane %v1249, 2
  %v1328 = vsel %vm619, %v1326, %v1327
  %v1329 = vrot.slane %v1250, 2
  %v1330 = vrot.slane %v1251, 2
  %v1331 = vsel %vm619, %v1329, %v1330
  %v1348 = vadd.f32 %v1200, %v1286
  %v1349 = vadd.f32 %v1201, %v1289
  %v1350 = vadd.f32 %v1202, %v1292
  %v1351 = vadd.f32 %v1203, %v1295
  %v1352 = vadd.f32 %v1204, %v1298
  %v1353 = vadd.f32 %v1205, %v1301
  %v1354 = vadd.f32 %v1206, %v1304
  %v1355 = vadd.f32 %v1207, %v1307
  %v1356 = vadd.f32 %v1208, %v1310
  %v1357 = vadd.f32 %v1209, %v1313
  %v1358 = vadd.f32 %v1210, %v1316
  %v1359 = vadd.f32 %v1211, %v1319
  %v1360 = vadd.f32 %v1212, %v1322
  %v1361 = vadd.f32 %v1213, %v1325
  %v1362 = vadd.f32 %v1214, %v1328
  %v1363 = vadd.f32 %v1215, %v1331
  %v1364 = vld [vmem:[%s4] sm:$0x1]
  %v1366 = vlaneseq
  %v1367 = vshrl.u32 %v1366, 7
  %v1368 = vsub.s32 0, %v1367
  %v1369 = vrot.slane %v1364, %v1368
  %v1371 = vmul.f32 %v1348, %v1369
  %v1372 = vmul.f32 %v1349, %v1369
  %v1373 = vmul.f32 %v1350, %v1369
  %v1374 = vmul.f32 %v1351, %v1369
  %v1375 = vmul.f32 %v1352, %v1369
  %v1376 = vmul.f32 %v1353, %v1369
  %v1377 = vmul.f32 %v1354, %v1369
  %v1378 = vmul.f32 %v1355, %v1369
  %v1379 = vmul.f32 %v1356, %v1369
  %v1380 = vmul.f32 %v1357, %v1369
  %v1381 = vmul.f32 %v1358, %v1369
  %v1382 = vmul.f32 %v1359, %v1369
  %v1383 = vmul.f32 %v1360, %v1369
  %v1384 = vmul.f32 %v1361, %v1369
  %v1385 = vmul.f32 %v1362, %v1369
  %v1386 = vmul.f32 %v1363, %v1369
  %v1387 = vld [vmem:[%s5] sm:$0x1]
  %v1389 = vlaneseq
  %v1390 = vshrl.u32 %v1389, 7
  %v1391 = vsub.s32 0, %v1390
  %v1392 = vrot.slane %v1387, %v1391
  %v1394 = vadd.f32 %v1371, %v1392
  %v1395 = vadd.f32 %v1372, %v1392
  %v1396 = vadd.f32 %v1373, %v1392
  %v1397 = vadd.f32 %v1374, %v1392
  %v1398 = vadd.f32 %v1375, %v1392
  %v1399 = vadd.f32 %v1376, %v1392
  %v1400 = vadd.f32 %v1377, %v1392
  %v1401 = vadd.f32 %v1378, %v1392
  %v1402 = vadd.f32 %v1379, %v1392
  %v1403 = vadd.f32 %v1380, %v1392
  %v1404 = vadd.f32 %v1381, %v1392
  %v1405 = vadd.f32 %v1382, %v1392
  %v1406 = vadd.f32 %v1383, %v1392
  %v1407 = vadd.f32 %v1384, %v1392
  %v1408 = vadd.f32 %v1385, %v1392
  %v1409 = vadd.f32 %v1386, %v1392
  %v1410 = vmul.f32 %v1394, 0.5
  %v1411 = vmul.f32 %v1395, 0.5
  %v1412 = vmul.f32 %v1396, 0.5
  %v1413 = vmul.f32 %v1397, 0.5
  %v1414 = vmul.f32 %v1398, 0.5
  %v1415 = vmul.f32 %v1399, 0.5
  %v1416 = vmul.f32 %v1400, 0.5
  %v1417 = vmul.f32 %v1401, 0.5
  %v1418 = vmul.f32 %v1402, 0.5
  %v1419 = vmul.f32 %v1403, 0.5
  %v1420 = vmul.f32 %v1404, 0.5
  %v1421 = vmul.f32 %v1405, 0.5
  %v1422 = vmul.f32 %v1406, 0.5
  %v1423 = vmul.f32 %v1407, 0.5
  %v1424 = vmul.f32 %v1408, 0.5
  %v1425 = vmul.f32 %v1409, 0.5
  %v1426 = vmul.f32 %v1394, 0.70710677
  %v1427 = vmul.f32 %v1395, 0.70710677
  %v1428 = vmul.f32 %v1396, 0.70710677
  %v1429 = vmul.f32 %v1397, 0.70710677
  %v1430 = vmul.f32 %v1398, 0.70710677
  %v1431 = vmul.f32 %v1399, 0.70710677
  %v1432 = vmul.f32 %v1400, 0.70710677
  %v1433 = vmul.f32 %v1401, 0.70710677
  %v1434 = vmul.f32 %v1402, 0.70710677
  %v1435 = vmul.f32 %v1403, 0.70710677
  %v1436 = vmul.f32 %v1404, 0.70710677
  %v1437 = vmul.f32 %v1405, 0.70710677
  %v1438 = vmul.f32 %v1406, 0.70710677
  %v1439 = vmul.f32 %v1407, 0.70710677
  %v1440 = vmul.f32 %v1408, 0.70710677
  %v1441 = vmul.f32 %v1409, 0.70710677
  %v1442 = verf.f32.pop %v1426
  %v1443 = verf.f32.pop %v1427
  %v1444 = verf.f32.pop %v1428
  %v1445 = verf.f32.pop %v1429
  %v1446 = verf.f32.pop %v1430
  %v1447 = verf.f32.pop %v1431
  %v1448 = verf.f32.pop %v1432
  %v1449 = verf.f32.pop %v1433
  %v1450 = verf.f32.pop %v1434
  %v1451 = verf.f32.pop %v1435
  %v1452 = verf.f32.pop %v1436
  %v1453 = verf.f32.pop %v1437
  %v1454 = verf.f32.pop %v1438
  %v1455 = verf.f32.pop %v1439
  %v1456 = verf.f32.pop %v1440
  %v1457 = verf.f32.pop %v1441
  %v1458 = vadd.f32 %v1442, 1.0
  %v1459 = vadd.f32 %v1443, 1.0
  %v1460 = vadd.f32 %v1444, 1.0
  %v1461 = vadd.f32 %v1445, 1.0
  %v1462 = vadd.f32 %v1446, 1.0
  %v1463 = vadd.f32 %v1447, 1.0
  %v1464 = vadd.f32 %v1448, 1.0
  %v1465 = vadd.f32 %v1449, 1.0
  %v1466 = vadd.f32 %v1450, 1.0
  %v1467 = vadd.f32 %v1451, 1.0
  %v1468 = vadd.f32 %v1452, 1.0
  %v1469 = vadd.f32 %v1453, 1.0
  %v1470 = vadd.f32 %v1454, 1.0
  %v1471 = vadd.f32 %v1455, 1.0
  %v1472 = vadd.f32 %v1456, 1.0
  %v1473 = vadd.f32 %v1457, 1.0
  %v1474 = vmul.f32 %v1410, %v1458
  %v1475 = vmul.f32 %v1411, %v1459
  %v1476 = vmul.f32 %v1412, %v1460
  %v1477 = vmul.f32 %v1413, %v1461
  %v1478 = vmul.f32 %v1414, %v1462
  %v1479 = vmul.f32 %v1415, %v1463
  %v1480 = vmul.f32 %v1416, %v1464
  %v1481 = vmul.f32 %v1417, %v1465
  %v1482 = vmul.f32 %v1418, %v1466
  %v1483 = vmul.f32 %v1419, %v1467
  %v1484 = vmul.f32 %v1420, %v1468
  %v1485 = vmul.f32 %v1421, %v1469
  %v1486 = vmul.f32 %v1422, %v1470
  %v1487 = vmul.f32 %v1423, %v1471
  %v1488 = vmul.f32 %v1424, %v1472
  %v1489 = vmul.f32 %v1425, %v1473
  %1490 = vst.msk [vmem:[%s6] sm:$0xff] %vm264, %v1474
  %1491 = vst.msk [vmem:[%s6 + $0x8] sm:$0xff] %vm264, %v1475
  %1492 = vst.msk [vmem:[%s6 + $0x10] sm:$0xff] %vm264, %v1476
  %1493 = vst.msk [vmem:[%s6 + $0x18] sm:$0xff] %vm264, %v1477
  %1494 = vst.msk [vmem:[%s6 + $0x20] sm:$0xff] %vm264, %v1478
  %1495 = vst.msk [vmem:[%s6 + $0x28] sm:$0xff] %vm264, %v1479
  %1496 = vst.msk [vmem:[%s6 + $0x30] sm:$0xff] %vm264, %v1480
  %1497 = vst.msk [vmem:[%s6 + $0x38] sm:$0xff] %vm264, %v1481
  %1498 = vst.msk [vmem:[%s6 + $0x40] sm:$0xff] %vm264, %v1482
  %1499 = vst.msk [vmem:[%s6 + $0x48] sm:$0xff] %vm264, %v1483
  %1500 = vst.msk [vmem:[%s6 + $0x50] sm:$0xff] %vm264, %v1484
  %1501 = vst.msk [vmem:[%s6 + $0x58] sm:$0xff] %vm264, %v1485
  %1502 = vst.msk [vmem:[%s6 + $0x60] sm:$0xff] %vm264, %v1486
  %1503 = vst.msk [vmem:[%s6 + $0x68] sm:$0xff] %vm264, %v1487
  %1504 = vst.msk [vmem:[%s6 + $0x70] sm:$0xff] %vm264, %v1488
  %1505 = vst.msk [vmem:[%s6 + $0x78] sm:$0xff] %vm264, %v1489
  // Predicated region
  $region26: #{graph_convolution_forward.1} parent=0 // pred_check
    _
  $region27: #{graph_convolution_forward.1} parent=0 // pred_check_branch
    %1507 = sbr.rel (0) target = $region29
  $region28: #{graph_convolution_forward.1} parent=0 // pred_region
    _
  $region29: #{graph_convolution_forward.1} parent=0 // pred_fallthru
    _
  // Predicated region
  $region30: #{graph_convolution_forward.1} parent=0 // pred_check
    _
  $region31: #{graph_convolution_forward.1} parent=0 // pred_check_branch
    %1509 = sbr.rel (0) target = $region33
  $region32: #{graph_convolution_forward.1} parent=0 // pred_region
    _
  $region33: #{graph_convolution_forward.1} parent=0 // pred_fallthru
    _

</llo_original>
